<compile_context>
chip_gen: v7x
topology: tpu7x:2x2x1
jax: 0.10.0
libtpu: 0.0.40
codegen_flags: <defaults>
</compile_context>

<pallas_src>
import jax
import jax.numpy as jnp
import numpy as np
from jax.experimental import pallas as pl
from jax.experimental.pallas import tpu as pltpu

EPS = 1e-5
LANE = 128            # channel dim padded to the 128-lane vreg width
MAX_ROW_TILE = 512    # row tile for the (stride-2) im2col mat-mul path


def _round_up(x, m):
    return (x + m - 1) // m * m


# ---------------------------------------------------------------------------
# kernels
# ---------------------------------------------------------------------------
def _make_shiftconv_kernel(Wp, Mout, out_off):
    """3x3 / stride-1 / pad-1 conv over one image with taps built in VMEM.

    Input rows enumerate the zero-padded image ((H+2)*(W+2) rows + 2 guard
    rows, channels last).  Output rows enumerate (H, W+2); the last two
    columns of every row are junk and are zeroed by `omask` so they never
    reach the BN statistics or the next stage's padding.  The masked result
    is written at row offset `out_off` inside a zero-filled block, which lets
    this kernel emit directly the padded layout stage 2 consumes.
    """
    def kernel(x_ref, w_ref, omask_ref, o_ref, s_ref, ss_ref, acc_ref):
        acc_ref[...] = jnp.zeros_like(acc_ref)
        for k in range(9):                      # taps = constant-offset slices
            kh, kw = divmod(k, 3)
            tap = x_ref[pl.ds(kh * Wp + kw, Mout), :]
            acc_ref[...] += jnp.dot(tap, w_ref[k],
                                    preferred_element_type=jnp.float32)
        accm = acc_ref[...] * omask_ref[...]    # zero the junk columns
        s_ref[...] = jnp.sum(accm, axis=0, keepdims=True)
        ss_ref[...] = jnp.sum(accm * accm, axis=0, keepdims=True)
        o_ref[...] = jnp.zeros_like(o_ref)      # borders / guard rows -> 0
        o_ref[pl.ds(out_off, Mout), :] = accm.astype(o_ref.dtype)
    return kernel


def _make_shiftconv_fused_kernel(Wp, Mout, has_sc):
    """Stage-2 kernel: fused BN1+ReLU on the input, 3x3 stride-1 conv with
    in-VMEM taps (+ optional 1x1 shortcut mat-mul), plus per-channel BN
    partial sums for conv2 and the shortcut."""
    def kernel(*refs):
        if has_sc:
            (x_ref, s1_ref, b1_ref, imask_ref, w_ref, omask_ref,
             xsc_ref, wsc_ref,
             o_ref, s_ref, ss_ref, osc_ref, ssc_ref, sssc_ref,
             acc_ref, y_ref) = refs
        else:
            (x_ref, s1_ref, b1_ref, imask_ref, w_ref, omask_ref,
             o_ref, s_ref, ss_ref, acc_ref, y_ref) = refs

        # Stage-1 BatchNorm + ReLU, fused here.  The interior mask forces the
        # spatial zero-padding (and the guard rows) back to exactly zero.
        act = jnp.maximum(
            x_ref[...].astype(jnp.float32) * s1_ref[...] + b1_ref[...], 0.0)
        y_ref[...] = (act * imask_ref[...]).astype(y_ref.dtype)

        acc_ref[...] = jnp.zeros_like(acc_ref)
        for k in range(9):
            kh, kw = divmod(k, 3)
            tap = y_ref[pl.ds(kh * Wp + kw, Mout), :]
            acc_ref[...] += jnp.dot(tap, w_ref[k],
                                    preferred_element_type=jnp.float32)
        acc = acc_ref[...]
        accm = acc * omask_ref[...]
        o_ref[...] = acc.astype(o_ref.dtype)
        s_ref[...] = jnp.sum(accm, axis=0, keepdims=True)
        ss_ref[...] = jnp.sum(accm * accm, axis=0, keepdims=True)

        if has_sc:  # 1x1 strided shortcut conv (stride applied in the glue)
            sc = jnp.dot(xsc_ref[...], wsc_ref[...],
                         preferred_element_type=jnp.float32)
            osc_ref[...] = sc.astype(osc_ref.dtype)
            ssc_ref[...] = jnp.sum(sc, axis=0, keepdims=True)
            sssc_ref[...] = jnp.sum(sc * sc, axis=0, keepdims=True)
    return kernel


def _rowmm_stats_kernel(taps_ref, w_ref, o_ref, s_ref, ss_ref):
    """Fused-K im2col mat-mul + BN partial sums (strided conv1 only).
    Padded tap rows are exactly zero, so no row mask is needed."""
    acc = jnp.dot(taps_ref[...], w_ref[...], preferred_element_type=jnp.float32)
    o_ref[...] = acc.astype(o_ref.dtype)
    s_ref[...] = jnp.sum(acc, axis=0, keepdims=True)
    ss_ref[...] = jnp.sum(acc * acc, axis=0, keepdims=True)


def _make_finish_kernel(mode):
    """y = relu(conv2*s2 + b2 + shortcut) with pre-folded BN scale/shift.

    mode: 'add_aff' -> shortcut is a raw 1x1 conv with its own scale/shift.
          'add_id'  -> shortcut is the identity input (added as-is).
    """
    def kernel(*refs):
        if mode == 'add_aff':
            a_ref, sa_ref, ba_ref, b_ref, sb_ref, bb_ref, o_ref = refs
            h = (a_ref[...].astype(jnp.float32) * sa_ref[...] + ba_ref[...]
                 + b_ref[...].astype(jnp.float32) * sb_ref[...] + bb_ref[...])
        else:  # 'add_id'
            a_ref, sa_ref, ba_ref, b_ref, o_ref = refs
            h = (a_ref[...].astype(jnp.float32) * sa_ref[...] + ba_ref[...]
                 + b_ref[...].astype(jnp.float32))
        o_ref[...] = jnp.maximum(h, 0.0).astype(o_ref.dtype)
    return kernel


# ---------------------------------------------------------------------------
# glue
# ---------------------------------------------------------------------------
def _im2col_taps_bf16(x, stride):
    """XLA-side im2col (taps fused along K) -- only used for the strided conv1,
    where the tap matrix is 9/stride^2 = 2.25x the input, not 9x."""
    N, H, W, C = x.shape
    Ho = (H - 1) // stride + 1
    Wo = (W - 1) // stride + 1
    R = N * Ho * Wo
    xp = jnp.pad(x, ((0, 0), (1, 1), (1, 1), (0, 0)))
    taps = [xp[:, kh:kh + (Ho - 1) * stride + 1:stride,
                  kw:kw + (Wo - 1) * stride + 1:stride, :]
            for kh in range(3) for kw in range(3)]
    t = jnp.concatenate(taps, axis=-1).reshape(R, 9 * C)
    TR = min(MAX_ROW_TILE, _round_up(R, 16))
    R_pad = _round_up(R, TR)
    t = jnp.pad(t, ((0, R_pad - R), (0, 0)))
    return t.astype(jnp.bfloat16), TR, R_pad


def basic_block_forward(x_nchw, params, stride):
    """BasicBlock forward (training-mode BN). Returns NHWC (N, Ho, Wo, planes)."""
    N, Cin, H, W = x_nchw.shape
    P = params['w1'].shape[-1]                       # planes (expansion == 1)
    has_sc = (stride != 1) or (Cin != P)
    Pp = _round_up(P, LANE)                          # lane-dense channel padding

    x = jnp.transpose(x_nchw, (0, 2, 3, 1)).astype(jnp.float32)   # NHWC
    Ho = (H - 1) // stride + 1                       # conv1 / block output spatial
    Wo = (W - 1) // stride + 1
    R = N * Ho * Wo                                  # real pixels per conv output

    Wp = Wo + 2                                      # padded row pitch for stage 2
    Hp = Ho + 2
    Min = Hp * Wp + 2                                # padded rows / image + 2 guards
    Mout = Ho * Wp                                   # conv rows / image (2 junk cols)

    cparams = pltpu.CompilerParams(
        dimension_semantics=("parallel",),           # images / row tiles independent
        vmem_limit_bytes=48 * 1024 * 1024)           # fits v5e/v6e/v7x budgets
    # TODO(synk): use pltpu.CORE_PARALLEL on v7x to shard the grid over both TCs.

    def pack_w3(w, ci_pad):     # (3,3,Ci,P) HWIO -> (9, ci_pad, Pp) bf16, zero-padded
        ci = w.shape[2]
        w9 = jnp.pad(w.reshape(9, ci, P), ((0, 0), (0, ci_pad - ci), (0, Pp - P)))
        return w9.astype(jnp.bfloat16)

    def pad_cvec(v):            # (P,) -> (1, Pp) f32
        return jnp.pad(v.reshape(1, P), ((0, 0), (0, Pp - P))).astype(jnp.float32)

    def bn_fold(s, ss, gamma, beta):
        # Fold batch stats + gamma/beta into a single per-channel scale/shift.
        mean = jnp.sum(s, axis=0) / R                              # (1, Pp)
        var = jnp.maximum(jnp.sum(ss, axis=0) / R - mean * mean, 0.0)
        scale = pad_cvec(gamma) * jax.lax.rsqrt(var + EPS)
        shift = pad_cvec(beta) - mean * scale
        return scale, shift

    def img_spec(rows, cols):
        return pl.BlockSpec((None, rows, cols), lambda n: (n, 0, 0))

    def full2_spec(r, c):
        return pl.BlockSpec((r, c), lambda n: (0, 0))

    stat_spec = pl.BlockSpec((None, 1, Pp), lambda n: (n, 0, 0))
    stat_shape = jax.ShapeDtypeStruct((N, 1, Pp), jnp.float32)

    # column mask over the per-image output rows: 1 for real columns (< Wo)
    omask = jnp.asarray((np.arange(Mout) % Wp < Wo)
                        .astype(np.float32).reshape(Mout, 1))

    # ---- stage 1: conv1 (raw) + BN partial sums -------------------------------
    if stride == 1:
        # In-kernel im2col; the kernel writes straight into the padded layout
        # ((Hp*Wp + 2) rows, zero borders) that stage 2 consumes.
        xpad = jnp.pad(x, ((0, 0), (1, 1), (1, 1), (0, 0)))
        xrows = jnp.pad(xpad.reshape(N, (H + 2) * (W + 2), Cin),
                        ((0, 0), (0, 2), (0, 0))).astype(jnp.bfloat16)
        conv1_pad, s1, ss1 = pl.pallas_call(
            _make_shiftconv_kernel(Wp, Mout, out_off=Wp + 1),
            grid=(N,),
            in_specs=[img_spec(Min, Cin),
                      pl.BlockSpec((9, Cin, Pp), lambda n: (0, 0, 0)),
                      full2_spec(Mout, 1)],
            out_specs=[img_spec(Min, Pp), stat_spec, stat_spec],
            out_shape=[jax.ShapeDtypeStruct((N, Min, Pp), jnp.bfloat16),
                       stat_shape, stat_shape],
            scratch_shapes=[pltpu.VMEM((Mout, Pp), jnp.float32)],
            compiler_params=cparams,
        )(xrows, pack_w3(params['w1'], Cin), omask)
    else:
        # Strided conv1: fused-K row mat-mul on an XLA-built tap matrix, then
        # one pad pass into the stage-2 layout.
        # TODO(synk): build the strided taps in-kernel too (phase-decomposed DMA).
        taps1, TR, R_pad = _im2col_taps_bf16(x, stride)
        nt = R_pad // TR
        w1_flat = jnp.pad(params['w1'].reshape(9 * Cin, P),
                          ((0, 0), (0, Pp - P))).astype(jnp.bfloat16)
        conv1_rows, s1, ss1 = pl.pallas_call(
            _rowmm_stats_kernel,
            grid=(nt,),
            in_specs=[pl.BlockSpec((TR, 9 * Cin), lambda i: (i, 0)),
                      pl.BlockSpec((9 * Cin, Pp), lambda i: (0, 0))],
            out_specs=[pl.BlockSpec((TR, Pp), lambda i: (i, 0)),
                       pl.BlockSpec((None, 1, Pp), lambda i: (i, 0, 0)),
                       pl.BlockSpec((None, 1, Pp), lambda i: (i, 0, 0))],
            out_shape=[jax.ShapeDtypeStruct((R_pad, Pp), jnp.bfloat16),
                       jax.ShapeDtypeStruct((nt, 1, Pp), jnp.float32),
                       jax.ShapeDtypeStruct((nt, 1, Pp), jnp.float32)],
            compiler_params=cparams,
        )(taps1, w1_flat)
        c1 = jnp.pad(conv1_rows[:R].reshape(N, Ho, Wo, Pp),
                     ((0, 0), (1, 1), (1, 1), (0, 0)))
        conv1_pad = jnp.pad(c1.reshape(N, Hp * Wp, Pp), ((0, 0), (0, 2), (0, 0)))

    scale1, shift1 = bn_fold(s1, ss1, params['g1'], params['b1'])

    # ---- stage 2: fused BN1+ReLU, conv2 (+ shortcut), BN partial sums ----------
    rr = np.arange(Hp * Wp)
    interior = ((rr // Wp >= 1) & (rr // Wp <= Ho)
                & (rr % Wp >= 1) & (rr % Wp <= Wo)).astype(np.float32)
    imask = jnp.asarray(np.concatenate([interior, np.zeros(2, np.float32)])
                        .reshape(Min, 1))

    w2p = pack_w3(params['w2'], Pp)                  # K padded to Pp (no channel slice)

    in_specs = [img_spec(Min, Pp), full2_spec(1, Pp), full2_spec(1, Pp),
                full2_spec(Min, 1),
                pl.BlockSpec((9, Pp, Pp), lambda n: (0, 0, 0)),
                full2_spec(Mout, 1)]
    out_specs = [img_spec(Mout, Pp), stat_spec, stat_spec]
    out_shape = [jax.ShapeDtypeStruct((N, Mout, Pp), jnp.bfloat16),
                 stat_shape, stat_shape]
    args = [conv1_pad, scale1, shift1, imask, w2p, omask]
    if has_sc:
        xs = jnp.pad(x[:, ::stride, ::stride, :], ((0, 0), (0, 0), (0, 2), (0, 0)))
        xsc_rows = xs.reshape(N, Mout, Cin).astype(jnp.bfloat16)
        wsc_p = jnp.pad(params['wsc'], ((0, 0), (0, Pp - P))).astype(jnp.bfloat16)
        in_specs += [img_spec(Mout, Cin), full2_spec(Cin, Pp)]
        out_specs += [img_spec(Mout, Pp), stat_spec, stat_spec]
        out_shape += [jax.ShapeDtypeStruct((N, Mout, Pp), jnp.bfloat16),
                      stat_shape, stat_shape]
        args += [xsc_rows, wsc_p]

    outs = pl.pallas_call(
        _make_shiftconv_fused_kernel(Wp, Mout, has_sc),
        grid=(N,),
        in_specs=in_specs,
        out_specs=out_specs,
        out_shape=out_shape,
        scratch_shapes=[pltpu.VMEM((Mout, Pp), jnp.float32),
                        pltpu.VMEM((Min, Pp), jnp.bfloat16)],
        compiler_params=cparams,
    )(*args)
    if has_sc:
        conv2, s2, ss2, sc_raw, s_sc, ss_sc = outs
    else:
        conv2, s2, ss2 = outs

    scale2, shift2 = bn_fold(s2, ss2, params['g2'], params['b2'])

    # ---- BN2 + shortcut add + ReLU ---------------------------------------------
    if has_sc:
        scale_s, shift_s = bn_fold(s_sc, ss_sc, params['gsc'], params['bsc'])
        out_full = pl.pallas_call(
            _make_finish_kernel('add_aff'),
            grid=(N,),
            in_specs=[img_spec(Mout, Pp), full2_spec(1, Pp), full2_spec(1, Pp),
                      img_spec(Mout, Pp), full2_spec(1, Pp), full2_spec(1, Pp)],
            out_specs=img_spec(Mout, Pp),
            out_shape=jax.ShapeDtypeStruct((N, Mout, Pp), jnp.float32),
            compiler_params=cparams,
        )(conv2, scale2, shift2, sc_raw, scale_s, shift_s)
    else:
        x_id = jnp.pad(x, ((0, 0), (0, 0), (0, 2), (0, Pp - Cin))
                       ).reshape(N, Mout, Pp)
        out_full = pl.pallas_call(
            _make_finish_kernel('add_id'),
            grid=(N,),
            in_specs=[img_spec(Mout, Pp), full2_spec(1, Pp), full2_spec(1, Pp),
                      img_spec(Mout, Pp)],
            out_specs=img_spec(Mout, Pp),
            out_shape=jax.ShapeDtypeStruct((N, Mout, Pp), jnp.float32),
            compiler_params=cparams,
        )(conv2, scale2, shift2, x_id)

    # single padding-removal slice at the very end (junk columns + channel pad)
    return out_full.reshape(N, Ho, Wp, Pp)[:, :, :Wo, :P]


def basic_block_forward_nchw(x_nchw, params, stride):
    """PyTorch-layout convenience wrapper (adds one output transpose)."""
    return jnp.transpose(basic_block_forward(x_nchw, params, stride), (0, 3, 1, 2))


# ---------------- pure-JAX reference (same math, XLA conv, f32) ----------------
def basic_block_reference(x_nchw, params, stride):
    x = jnp.transpose(x_nchw, (0, 2, 3, 1)).astype(jnp.float32)
    Cin = x.shape[-1]
    P = params['w1'].shape[-1]
    has_sc = (stride != 1) or (Cin != P)

    def conv(v, w, s, pad):
        return jax.lax.conv_general_dilated(
            v, w, (s, s), pad, dimension_numbers=('NHWC', 'HWIO', 'NHWC'),
            precision=jax.lax.Precision.HIGHEST)

    def bn(v, g, b):
        mean = jnp.mean(v, axis=(0, 1, 2), keepdims=True)
        var = jnp.mean(jnp.square(v - mean), axis=(0, 1, 2), keepdims=True)
        return (v - mean) * (g * jax.lax.rsqrt(var + EPS)) + b

    out = jax.nn.relu(bn(conv(x, params['w1'], stride, ((1, 1), (1, 1))),
                         params['g1'], params['b1']))
    out = bn(conv(out, params['w2'], 1, ((1, 1), (1, 1))),
             params['g2'], params['b2'])
    if has_sc:
        sc = bn(conv(x, params['wsc'].reshape(1, 1, Cin, P), stride, ((0, 0), (0, 0))),
                params['gsc'], params['bsc'])
    else:
        sc = x
    return jax.nn.relu(out + sc)     # NHWC


if __name__ == "__main__":
    def make_params(key, cin, planes, has_sc):
        ks = jax.random.split(key, 9)
        p = {
            'w1': jax.random.normal(ks[0], (3, 3, cin, planes), jnp.float32)
                  / np.sqrt(9 * cin),
            'g1': 1.0 + 0.1 * jax.random.normal(ks[1], (planes,), jnp.float32),
            'b1': 0.1 * jax.random.normal(ks[2], (planes,), jnp.float32),
            'w2': jax.random.normal(ks[3], (3, 3, planes, planes), jnp.float32)
                  / np.sqrt(9 * planes),
            'g2': 1.0 + 0.1 * jax.random.normal(ks[4], (planes,), jnp.float32),
            'b2': 0.1 * jax.random.normal(ks[5], (planes,), jnp.float32),
        }
        if has_sc:
            p['wsc'] = jax.random.normal(ks[6], (cin, planes), jnp.float32) / np.sqrt(cin)
            p['gsc'] = 1.0 + 0.1 * jax.random.normal(ks[7], (planes,), jnp.float32)
            p['bsc'] = 0.1 * jax.random.normal(ks[8], (planes,), jnp.float32)
        return p

    key = jax.random.PRNGKey(0)
    # (NCHW shape, planes, stride): strided conv shortcut, identity shortcut,
    # and a stride-1 conv shortcut (Cin != planes).
    cases = [((2, 4, 16, 16), 8, 2),
             ((2, 8, 16, 16), 8, 1),
             ((2, 4, 16, 16), 8, 1)]
    for shape, planes, stride in cases:
        key, k_p, k_x = jax.random.split(key, 3)
        _, cin, _, _ = shape
        has_sc = (stride != 1) or (cin != planes)
        params = make_params(k_p, cin, planes, has_sc)
        x = jax.random.normal(k_x, shape, jnp.float32)      # NCHW like PyTorch
        out = jax.block_until_ready(basic_block_forward(x, params, stride))
        ref = jax.block_until_ready(basic_block_reference(x, params, stride))
        # bf16 MXU operands + bf16 intermediate storage vs. f32 reference.
        np.testing.assert_allclose(np.asarray(out), np.asarray(ref),
                                   rtol=3e-2, atol=3e-2)
    print("KERNEL_OK")
</pallas_src>

<mosaic_0001>
module attributes {stable_mosaic.version = 11 : i64} {
  func.func @_rowmm_stats_kernel(%arg0: i32, %arg1: memref<128x36xbf16, #tpu.memory_space<vmem>>, %arg2: memref<36x128xbf16, #tpu.memory_space<vmem>>, %arg3: memref<128x128xbf16, #tpu.memory_space<vmem>>, %arg4: memref<1x1x128xf32, #tpu.memory_space<vmem>>, %arg5: memref<1x1x128xf32, #tpu.memory_space<vmem>>) attributes {dimension_semantics = [#tpu.dimension_semantics<parallel>], iteration_bounds = array<i64: 1>, scalar_prefetch = 0 : i64, scratch_operands = 0 : i64, tpu.core_type = #tpu.core_type<tc>, window_params = [{transform_indices = @transform_0, window_bounds = array<i64: 128, 36>}, {pipeline_mode = #tpu.pipeline_mode<synchronous>, transform_indices = @transform_1, window_bounds = array<i64: 36, 128>}, {transform_indices = @transform_2, window_bounds = array<i64: 128, 128>}, {transform_indices = @transform_3, window_bounds = array<i64: 1, 1, 128>}, {transform_indices = @transform_4, window_bounds = array<i64: 1, 1, 128>}]} {
    %c0 = arith.constant 0 : index
    %c0_0 = arith.constant 0 : index
    %0 = vector.load %arg1[%c0, %c0_0] : memref<128x36xbf16, #tpu.memory_space<vmem>>, vector<128x36xbf16>
    %c0_1 = arith.constant 0 : index
    %c0_2 = arith.constant 0 : index
    %1 = vector.load %arg2[%c0_1, %c0_2] : memref<36x128xbf16, #tpu.memory_space<vmem>>, vector<36x128xbf16>
    %cst = arith.constant dense<0.000000e+00> : vector<128x128xf32>
    %2 = tpu.matmul %0, %1, %cst {dimension_numbers = #tpu.dot_dimension_numbers<[1], [0], [0], [1], [0, 0, 1, 1], [], []>} : vector<128x36xbf16>, vector<36x128xbf16>, vector<128x128xf32> -> vector<128x128xf32>
    %3 = arith.truncf %2 : vector<128x128xf32> to vector<128x128xbf16>
    %c0_3 = arith.constant 0 : index
    %c0_4 = arith.constant 0 : index
    %4 = vector.load %arg3[%c0_3, %c0_4] : memref<128x128xbf16, #tpu.memory_space<vmem>>, vector<128x128xbf16>
    tpu.vector_store %arg3[%c0_3, %c0_4], %3 {strides = array<i32>} : memref<128x128xbf16, #tpu.memory_space<vmem>>, vector<128x128xbf16>,
    %cst_5 = arith.constant dense<0.000000e+00> : vector<128xf32>
    %5 = vector.multi_reduction <add>, %2, %cst_5 [0] : vector<128x128xf32> to vector<128xf32>
    %6 = vector.shape_cast %5 : vector<128xf32> to vector<1x128xf32>
    %c0_6 = arith.constant 0 : index
    %c0_7 = arith.constant 0 : index
    %c0_8 = arith.constant 0 : index
    %7 = vector.load %arg4[%c0_6, %c0_7, %c0_8] : memref<1x1x128xf32, #tpu.memory_space<vmem>>, vector<1x1x128xf32>
    %8 = vector.shape_cast %7 : vector<1x1x128xf32> to vector<1x128xf32>
    %9 = vector.shape_cast %6 : vector<1x128xf32> to vector<1x1x128xf32>
    tpu.vector_store %arg4[%c0_6, %c0_7, %c0_8], %9 {strides = array<i32>} : memref<1x1x128xf32, #tpu.memory_space<vmem>>, vector<1x1x128xf32>,
    %10 = arith.mulf %2, %2 : vector<128x128xf32>
    %cst_9 = arith.constant dense<0.000000e+00> : vector<128xf32>
    %11 = vector.multi_reduction <add>, %10, %cst_9 [0] : vector<128x128xf32> to vector<128xf32>
    %12 = vector.shape_cast %11 : vector<128xf32> to vector<1x128xf32>
    %c0_10 = arith.constant 0 : index
    %c0_11 = arith.constant 0 : index
    %c0_12 = arith.constant 0 : index
    %13 = vector.load %arg5[%c0_10, %c0_11, %c0_12] : memref<1x1x128xf32, #tpu.memory_space<vmem>>, vector<1x1x128xf32>
    %14 = vector.shape_cast %13 : vector<1x1x128xf32> to vector<1x128xf32>
    %15 = vector.shape_cast %12 : vector<1x128xf32> to vector<1x1x128xf32>
    tpu.vector_store %arg5[%c0_10, %c0_11, %c0_12], %15 {strides = array<i32>} : memref<1x1x128xf32, #tpu.memory_space<vmem>>, vector<1x1x128xf32>,
    return
  }
  func.func @transform_0(%arg0: i32) -> (i32, i32) {
    %c0_i32 = arith.constant 0 : i32
    %c0_i32_0 = arith.constant 0 : i32
    return %arg0, %c0_i32 : i32, i32
  }
  func.func @transform_1(%arg0: i32) -> (i32, i32) {
    %c0_i32 = arith.constant 0 : i32
    %c0_i32_0 = arith.constant 0 : i32
    %c0_i32_1 = arith.constant 0 : i32
    return %c0_i32, %c0_i32_0 : i32, i32
  }
  func.func @transform_2(%arg0: i32) -> (i32, i32) {
    %c0_i32 = arith.constant 0 : i32
    %c0_i32_0 = arith.constant 0 : i32
    return %arg0, %c0_i32 : i32, i32
  }
  func.func @transform_3(%arg0: i32) -> (i32, i32, i32) {
    %c0_i32 = arith.constant 0 : i32
    %c0_i32_0 = arith.constant 0 : i32
    %c0_i32_1 = arith.constant 0 : i32
    return %arg0, %c0_i32, %c0_i32_0 : i32, i32, i32
  }
  func.func @transform_4(%arg0: i32) -> (i32, i32, i32) {
    %c0_i32 = arith.constant 0 : i32
    %c0_i32_0 = arith.constant 0 : i32
    %c0_i32_1 = arith.constant 0 : i32
    return %arg0, %c0_i32, %c0_i32_0 : i32, i32, i32
  }
}

</mosaic_0001>

<llo_original>
// kernel: tpu_custom_call.1
$region0: #{tpu_custom_call.1}
  #allocation0 [shape = 'u32[]', space=smem, size = 0x4, offset = 0x4, fixed_abs, tag = 'smem constant byte address 0x4 - core index']
  #allocation1 [shape = 'u32[144,128]{1,0:T(1,128)}', space=vmem, size = 0x12000, scoped, tag = 'internal scratch']
  %s0 = inlined_call_operand.vmem [shape: bf16[128,36], index: 0, kind: input, shape index: {}]
  %s1 = inlined_call_operand.vmem [shape: bf16[36,128], index: 1, kind: input, shape index: {}]
  %s2 = inlined_call_operand.hbm [shape: bf16[128,128], index: 2, kind: output, shape index: {0}]
  %s3 = inlined_call_operand.hbm [shape: f32[1,1,128], index: 3, kind: output, shape index: {1}]
  %s4 = inlined_call_operand.hbm [shape: f32[1,1,128], index: 4, kind: output, shape index: {2}]
  %5 = xla_tuple %s2, %s3, %s4
  %s6 = sld [smem:[#allocation0]]
  $region34: #{tpu_custom_call.1} parent=0
    _
  %s8 = ssub.s32 1, %s6
  %s9 = scalar_select 0, %s8, %s6
  $region1: #{tpu_custom_call.1} parent=0
    #allocation2 [shape = 'u8[32768]{0}', space=vmem, size = 0x8000, scoped, tag = 'output window, operand 0, single buffered']
    #allocation3 [shape = 's32[1]{0}', space=sflag, size = 0x4, scoped, tag = 'scoped memory for tpu_custom_call.1']
    #allocation4 [shape = 'u8[512]{0}', space=vmem, size = 0x400, scoped, tag = 'output window, operand 1, single buffered']
    #allocation5 [shape = 's32[1]{0}', space=sflag, size = 0x4, scoped, tag = 'scoped memory for tpu_custom_call.1']
    #allocation6 [shape = 'u8[512]{0}', space=vmem, size = 0x400, scoped, tag = 'output window, operand 2, single buffered']
    %10 = vsyncpa [#allocation3], 0
    %11 = vsyncpa [#allocation5], 0
    // Predicated region
    $region2: #{tpu_custom_call.1} parent=1 // pred_check
      _
    $region3: #{tpu_custom_call.1} parent=1 // pred_check_branch
      %13 = sbr.rel (0) target = $region5
    $region4: #{tpu_custom_call.1} parent=1 // pred_region
      _
    $region5: #{tpu_custom_call.1} parent=1 // pred_fallthru
      _
    // Predicated region
    $region6: #{tpu_custom_call.1} parent=1 // pred_check
      _
    $region7: #{tpu_custom_call.1} parent=1 // pred_check_branch
      %15 = sbr.rel (0) target = $region9
    $region8: #{tpu_custom_call.1} parent=1 // pred_region
      _
    $region9: #{tpu_custom_call.1} parent=1 // pred_fallthru
      _
    %v17 = vld [vmem:[%s0] sm:$0xf]
    %v18 = vld [vmem:[%s0 + $0x4] sm:$0xf]
    %v19 = vld [vmem:[%s0 + $0x8] sm:$0xf]
    %v20 = vld [vmem:[%s0 + $0xc] sm:$0xf]
    %v21 = vld [vmem:[%s0 + $0x10] sm:$0xf]
    %v22 = vld [vmem:[%s0 + $0x14] sm:$0xf]
    %v23 = vld [vmem:[%s0 + $0x18] sm:$0xf]
    %v24 = vld [vmem:[%s0 + $0x1c] sm:$0xf]
    %v25 = vld [vmem:[%s0 + $0x20] sm:$0xf]
    %v26 = vld [vmem:[%s0 + $0x24] sm:$0xf]
    %v27 = vld [vmem:[%s0 + $0x28] sm:$0xf]
    %v28 = vld [vmem:[%s0 + $0x2c] sm:$0xf]
    %v29 = vld [vmem:[%s0 + $0x30] sm:$0xf]
    %v30 = vld [vmem:[%s0 + $0x34] sm:$0xf]
    %v31 = vld [vmem:[%s0 + $0x38] sm:$0xf]
    %v32 = vld [vmem:[%s0 + $0x3c] sm:$0xf]
    %v33 = vld [vmem:[%s1] sm:$0xf]
    %v34 = vld [vmem:[%s1 + $0x4] sm:$0xf]
    %v35 = vld [vmem:[%s1 + $0x8] sm:$0xf]
    %v36 = vld [vmem:[%s1 + $0xc] sm:$0xf]
    %v37 = vld [vmem:[%s1 + $0x10] sm:$0x3]
    %v54 = vunpack.c.l.b16 %v17
    %v55 = vunpack.c.l.b16 %v18
    %v56 = vunpack.c.l.b16 %v19
    %v57 = vunpack.c.l.b16 %v20
    %v58 = vunpack.c.l.b16 %v21
    %v59 = vunpack.c.l.b16 %v22
    %v60 = vunpack.c.l.b16 %v23
    %v61 = vunpack.c.l.b16 %v24
    %v62 = vunpack.c.l.b16 %v25
    %v63 = vunpack.c.l.b16 %v26
    %v64 = vunpack.c.l.b16 %v27
    %v65 = vunpack.c.l.b16 %v28
    %v66 = vunpack.c.l.b16 %v29
    %v67 = vunpack.c.l.b16 %v30
    %v68 = vunpack.c.l.b16 %v31
    %v69 = vunpack.c.l.b16 %v32
    %v70 = vpack.c.b16 %v55, %v54
    %v71 = vpack.c.b16 %v57, %v56
    %v72 = vpack.c.b16 %v59, %v58
    %v73 = vpack.c.b16 %v61, %v60
    %v74 = vpack.c.b16 %v63, %v62
    %v75 = vpack.c.b16 %v65, %v64
    %v76 = vpack.c.b16 %v67, %v66
    %v77 = vpack.c.b16 %v69, %v68
    %v83 = vunpack.c.l.b16 %v33
    %v84 = vunpack.c.l.b16 %v34
    %v85 = vunpack.c.l.b16 %v35
    %v86 = vunpack.c.l.b16 %v36
    %v87 = vunpack.c.l.b16 %v37
    %v88 = vpack.c.b16 %v84, %v83
    %v89 = vpack.c.b16 %v86, %v85
    %v90 = vpack.c.b16 %v87, %v87
    %vm93 = vcmask 293888
    %v95 = vsel %vm93, %v70, 0
    %v98 = vsel %vm93, %v71, 0
    %v101 = vsel %vm93, %v72, 0
    %v104 = vsel %vm93, %v73, 0
    %v107 = vsel %vm93, %v74, 0
    %v110 = vsel %vm93, %v75, 0
    %v113 = vsel %vm93, %v76, 0
    %v116 = vsel %vm93, %v77, 0
    %vm118 = vcmask 1041408
    %v120 = vsel %vm118, %v90, 0
    %122 = vmatprep.subr.bf16.mxu0 0
    %123 = vmatpush1.bf16.msra.mxu0 %v88
    %124 = vmatprep.subr.bf16.mxu0 0
    %125 = vmatpush1.bf16.msra.mxu0 %v89
    %126 = vmatprep.subr.bf16.mxu0 0
    %127 = vmatpush1.bf16.msra.mxu0 %v120
    %128 = vmatprep.subr.bf16.mxu0 0
    %129 = vmatpush1.bf16.msra.mxu0 0
    %130 = vmatprep.subr.bf16.mxu0 0
    %131 = vmatpush1.bf16.msra.mxu0 0
    %132 = vmatprep.subr.bf16.mxu0 0
    %133 = vmatpush1.bf16.msra.mxu0 0
    %134 = vmatprep.subr.bf16.mxu0 0
    %135 = vmatpush1.bf16.msra.mxu0 0
    %136 = vmatprep.subr.bf16.mxu0 0
    %137 = vmatpush1.bf16.msra.mxu0 0
    %138 = vmatprep.subr.bf16.mxu0 0
    %139 = vmatpush1.bf16.msra.mxu0 0
    %140 = vmatprep.subr.bf16.mxu0 0
    %141 = vmatpush1.bf16.msra.mxu0 0
    %142 = vmatprep.subr.bf16.mxu0 0
    %143 = vmatpush1.bf16.msra.mxu0 0
    %144 = vmatprep.subr.bf16.mxu0 0
    %145 = vmatpush1.bf16.msra.mxu0 0
    %146 = vmatprep.subr.bf16.mxu0 0
    %147 = vmatpush1.bf16.msra.mxu0 0
    %148 = vmatprep.subr.bf16.mxu0 0
    %149 = vmatpush1.bf16.msra.mxu0 0
    %150 = vmatprep.subr.bf16.mxu0 0
    %151 = vmatpush1.bf16.msra.mxu0 0
    %152 = vmatprep.subr.bf16.mxu0 0
    %153 = vmatpush1.bf16.msra.mxu0 0
    %154 = vmatprep.mubr.bf16.mxu0 0
    %155 = vmatmul.mubr.bf16.gmra.mrb[0].mxu0 %v95
    %v156 = vpop.f32.mrb[0].mxu0
    %v157 = vadd.f32 0.0, %v156
    %v158 = vpop.f32.mrb[0].mxu0
    %v159 = vpop.f32.mrb[0].mxu0
    %v160 = vadd.f32 0.0, %v159
    %v161 = vpop.f32.mrb[0].mxu0
    %162 = vmatprep.mubr.bf16.mxu0 0
    %163 = vmatmul.mubr.bf16.gmra.mrb[0].mxu0 %v98
    %v164 = vpop.f32.mrb[0].mxu0
    %v165 = vadd.f32 0.0, %v164
    %v166 = vpop.f32.mrb[0].mxu0
    %v167 = vpop.f32.mrb[0].mxu0
    %v168 = vadd.f32 0.0, %v167
    %v169 = vpop.f32.mrb[0].mxu0
    %170 = vmatprep.mubr.bf16.mxu0 0
    %171 = vmatmul.mubr.bf16.gmra.mrb[0].mxu0 %v101
    %v172 = vpop.f32.mrb[0].mxu0
    %v173 = vadd.f32 0.0, %v172
    %v174 = vpop.f32.mrb[0].mxu0
    %v175 = vpop.f32.mrb[0].mxu0
    %v176 = vadd.f32 0.0, %v175
    %v177 = vpop.f32.mrb[0].mxu0
    %178 = vmatprep.mubr.bf16.mxu0 0
    %179 = vmatmul.mubr.bf16.gmra.mrb[0].mxu0 %v104
    %v180 = vpop.f32.mrb[0].mxu0
    %v181 = vadd.f32 0.0, %v180
    %v182 = vpop.f32.mrb[0].mxu0
    %v183 = vpop.f32.mrb[0].mxu0
    %v184 = vadd.f32 0.0, %v183
    %v185 = vpop.f32.mrb[0].mxu0
    %186 = vmatprep.mubr.bf16.mxu0 0
    %187 = vmatmul.mubr.bf16.gmra.mrb[0].mxu0 %v107
    %v188 = vpop.f32.mrb[0].mxu0
    %v189 = vadd.f32 0.0, %v188
    %v190 = vpop.f32.mrb[0].mxu0
    %v191 = vpop.f32.mrb[0].mxu0
    %v192 = vadd.f32 0.0, %v191
    %v193 = vpop.f32.mrb[0].mxu0
    %194 = vmatprep.mubr.bf16.mxu0 0
    %195 = vmatmul.mubr.bf16.gmra.mrb[0].mxu0 %v110
    %v196 = vpop.f32.mrb[0].mxu0
    %v197 = vadd.f32 0.0, %v196
    %v198 = vpop.f32.mrb[0].mxu0
    %v199 = vpop.f32.mrb[0].mxu0
    %v200 = vadd.f32 0.0, %v199
    %v201 = vpop.f32.mrb[0].mxu0
    %202 = vmatprep.mubr.bf16.mxu0 0
    %203 = vmatmul.mubr.bf16.gmra.mrb[0].mxu0 %v113
    %v204 = vpop.f32.mrb[0].mxu0
    %v205 = vadd.f32 0.0, %v204
    %v206 = vpop.f32.mrb[0].mxu0
    %v207 = vpop.f32.mrb[0].mxu0
    %v208 = vadd.f32 0.0, %v207
    %v209 = vpop.f32.mrb[0].mxu0
    %210 = vmatprep.mubr.bf16.mxu0 0
    %211 = vmatmul.mubr.bf16.gmra.mrb[0].mxu0 %v116
    %v212 = vpop.f32.mrb[0].mxu0
    %v213 = vadd.f32 0.0, %v212
    %v214 = vpop.f32.mrb[0].mxu0
    %v215 = vpop.f32.mrb[0].mxu0
    %v216 = vadd.f32 0.0, %v215
    %v217 = vpop.f32.mrb[0].mxu0
    %218 = vdwg.mxu0
    %v219 = vpack.c.bf16 %v160, %v157
    %v220 = vpack.c.bf16 %v168, %v165
    %v221 = vpack.c.bf16 %v176, %v173
    %v222 = vpack.c.bf16 %v184, %v181
    %v223 = vpack.c.bf16 %v192, %v189
    %v224 = vpack.c.bf16 %v200, %v197
    %v225 = vpack.c.bf16 %v208, %v205
    %v226 = vpack.c.bf16 %v216, %v213
    %v235 = vunpack.c.l.b16 %v219
    %v236 = vunpack.c.h.b16 %v219
    %v237 = vunpack.c.l.b16 %v220
    %v238 = vunpack.c.h.b16 %v220
    %v239 = vunpack.c.l.b16 %v221
    %v240 = vunpack.c.h.b16 %v221
    %v241 = vunpack.c.l.b16 %v222
    %v242 = vunpack.c.h.b16 %v222
    %v243 = vunpack.c.l.b16 %v223
    %v244 = vunpack.c.h.b16 %v223
    %v245 = vunpack.c.l.b16 %v224
    %v246 = vunpack.c.h.b16 %v224
    %v247 = vunpack.c.l.b16 %v225
    %v248 = vunpack.c.h.b16 %v225
    %v249 = vunpack.c.l.b16 %v226
    %v250 = vunpack.c.h.b16 %v226
    %v251 = vpack.c.b16 %v235, %v235
    %v252 = vpack.c.b16 %v236, %v236
    %v253 = vpack.c.b16 %v237, %v237
    %v254 = vpack.c.b16 %v238, %v238
    %v255 = vpack.c.b16 %v239, %v239
    %v256 = vpack.c.b16 %v240, %v240
    %v257 = vpack.c.b16 %v241, %v241
    %v258 = vpack.c.b16 %v242, %v242
    %v259 = vpack.c.b16 %v243, %v243
    %v260 = vpack.c.b16 %v244, %v244
    %v261 = vpack.c.b16 %v245, %v245
    %v262 = vpack.c.b16 %v246, %v246
    %v263 = vpack.c.b16 %v247, %v247
    %v264 = vpack.c.b16 %v248, %v248
    %v265 = vpack.c.b16 %v249, %v249
    %v266 = vpack.c.b16 %v250, %v250
    %283 = vst [vmem:[#allocation2] sm:$0xf] %v251
    %284 = vst [vmem:[#allocation2 + $0x4] sm:$0xf] %v252
    %285 = vst [vmem:[#allocation2 + $0x8] sm:$0xf] %v253
    %286 = vst [vmem:[#allocation2 + $0xc] sm:$0xf] %v254
    %287 = vst [vmem:[#allocation2 + $0x10] sm:$0xf] %v255
    %288 = vst [vmem:[#allocation2 + $0x14] sm:$0xf] %v256
    %289 = vst [vmem:[#allocation2 + $0x18] sm:$0xf] %v257
    %290 = vst [vmem:[#allocation2 + $0x1c] sm:$0xf] %v258
    %291 = vst [vmem:[#allocation2 + $0x20] sm:$0xf] %v259
    %292 = vst [vmem:[#allocation2 + $0x24] sm:$0xf] %v260
    %293 = vst [vmem:[#allocation2 + $0x28] sm:$0xf] %v261
    %294 = vst [vmem:[#allocation2 + $0x2c] sm:$0xf] %v262
    %295 = vst [vmem:[#allocation2 + $0x30] sm:$0xf] %v263
    %296 = vst [vmem:[#allocation2 + $0x34] sm:$0xf] %v264
    %297 = vst [vmem:[#allocation2 + $0x38] sm:$0xf] %v265
    %298 = vst [vmem:[#allocation2 + $0x3c] sm:$0xf] %v266
    %v299 = vadd.f32 %v157, %v160
    %v300 = vadd.f32 %v299, %v165
    %v301 = vadd.f32 %v300, %v168
    %v302 = vadd.f32 %v301, %v173
    %v303 = vadd.f32 %v302, %v176
    %v304 = vadd.f32 %v303, %v181
    %v305 = vadd.f32 %v304, %v184
    %v306 = vadd.f32 %v305, %v189
    %v307 = vadd.f32 %v306, %v192
    %v308 = vadd.f32 %v307, %v197
    %v309 = vadd.f32 %v308, %v200
    %v310 = vadd.f32 %v309, %v205
    %v311 = vadd.f32 %v310, %v208
    %v312 = vadd.f32 %v311, %v213
    %v313 = vadd.f32 %v312, %v216
    %v314 = vrot.slane %v313, 4
    %v315 = vadd.f32 %v313, %v314
    %v316 = vrot.slane %v315, 2
    %v317 = vadd.f32 %v315, %v316
    %v318 = vrot.slane %v317, 1
    %v319 = vadd.f32 %v317, %v318
    %320 = vst [vmem:[#allocation4] sm:$0x1] %v319
    %v321 = vmul.f32 %v157, %v157
    %v322 = vmul.f32 %v160, %v160
    %v323 = vmul.f32 %v165, %v165
    %v324 = vmul.f32 %v168, %v168
    %v325 = vmul.f32 %v173, %v173
    %v326 = vmul.f32 %v176, %v176
    %v327 = vmul.f32 %v181, %v181
    %v328 = vmul.f32 %v184, %v184
    %v329 = vmul.f32 %v189, %v189
    %v330 = vmul.f32 %v192, %v192
    %v331 = vmul.f32 %v197, %v197
    %v332 = vmul.f32 %v200, %v200
    %v333 = vmul.f32 %v205, %v205
    %v334 = vmul.f32 %v208, %v208
    %v335 = vmul.f32 %v213, %v213
    %v336 = vmul.f32 %v216, %v216
    %v337 = vadd.f32 %v321, %v322
    %v338 = vadd.f32 %v337, %v323
    %v339 = vadd.f32 %v338, %v324
    %v340 = vadd.f32 %v339, %v325
    %v341 = vadd.f32 %v340, %v326
    %v342 = vadd.f32 %v341, %v327
    %v343 = vadd.f32 %v342, %v328
    %v344 = vadd.f32 %v343, %v329
    %v345 = vadd.f32 %v344, %v330
    %v346 = vadd.f32 %v345, %v331
    %v347 = vadd.f32 %v346, %v332
    %v348 = vadd.f32 %v347, %v333
    %v349 = vadd.f32 %v348, %v334
    %v350 = vadd.f32 %v349, %v335
    %v351 = vadd.f32 %v350, %v336
    %v352 = vrot.slane %v351, 4
    %v353 = vadd.f32 %v351, %v352
    %v354 = vrot.slane %v353, 2
    %v355 = vadd.f32 %v353, %v354
    %v356 = vrot.slane %v355, 1
    %v357 = vadd.f32 %v355, %v356
    %358 = vst [vmem:[#allocation6] sm:$0x1] %v357
    // Predicated region
    $region10: #{tpu_custom_call.1} parent=1 // pred_check
      _
    $region11: #{tpu_custom_call.1} parent=1 // pred_check_branch
      %360 = sbr.rel (0) target = $region13
    $region12: #{tpu_custom_call.1} parent=1 // pred_region
      %s362 = ssub.s32 1024, 1024
      %363 = vsyncadd [#allocation3], %s362
      %s364 = sshll.u32 [#allocation2], 4
      %s365 = int_to_ptr.vmem [resolvable:$true] %s364
      %370 = dma.vmem_to_hbm [thread:$0]  %s365, 1024, %s2, [#allocation3], 64, 64, 4
    $region13: #{tpu_custom_call.1} parent=1 // pred_fallthru
      _
    // Predicated region
    $region14: #{tpu_custom_call.1} parent=1 // pred_check
      _
    $region15: #{tpu_custom_call.1} parent=1 // pred_check_branch
      %372 = sbr.rel (0) target = $region17
    $region16: #{tpu_custom_call.1} parent=1 // pred_region
      %s374 = ssub.s32 16, 16
      %375 = vsyncadd [#allocation5], %s374
      %s377 = sshll.u32 [#allocation4], 4
      %s378 = int_to_ptr.vmem [resolvable:$true] %s377
      %380 = dma.vmem_to_hbm [thread:$0]  %s378, 16, %s3, [#allocation5]
    $region17: #{tpu_custom_call.1} parent=1 // pred_fallthru
      _
    // Predicated region
    $region18: #{tpu_custom_call.1} parent=1 // pred_check
      _
    $region19: #{tpu_custom_call.1} parent=1 // pred_check_branch
      %382 = sbr.rel (0) target = $region21
    $region20: #{tpu_custom_call.1} parent=1 // pred_region
      %s384 = ssub.s32 16, 16
      %385 = vsyncadd [#allocation5], %s384
      %s387 = sshll.u32 [#allocation6], 4
      %s388 = int_to_ptr.vmem [resolvable:$true] %s387
      %390 = dma.vmem_to_hbm [thread:$0]  %s388, 16, %s4, [#allocation5]
    $region21: #{tpu_custom_call.1} parent=1 // pred_fallthru
      _
    // Predicated region
    $region22: #{tpu_custom_call.1} parent=1 // pred_check
      _
    $region23: #{tpu_custom_call.1} parent=1 // pred_check_branch
      %392 = sbr.rel (0) target = $region25
    $region24: #{tpu_custom_call.1} parent=1 // pred_region
      %393 = dma.done [#allocation3], 1024
    $region25: #{tpu_custom_call.1} parent=1 // pred_fallthru
      _
    // Predicated region
    $region26: #{tpu_custom_call.1} parent=1 // pred_check
      _
    $region27: #{tpu_custom_call.1} parent=1 // pred_check_branch
      %395 = sbr.rel (0) target = $region29
    $region28: #{tpu_custom_call.1} parent=1 // pred_region
      %396 = dma.done [#allocation5], 16
    $region29: #{tpu_custom_call.1} parent=1 // pred_fallthru
      _
    // Predicated region
    $region30: #{tpu_custom_call.1} parent=1 // pred_check
      _
    $region31: #{tpu_custom_call.1} parent=1 // pred_check_branch
      %398 = sbr.rel (0) target = $region33
    $region32: #{tpu_custom_call.1} parent=1 // pred_region
      %399 = dma.done [#allocation5], 16
    $region33: #{tpu_custom_call.1} parent=1 // pred_fallthru
      _
    %400 = vsyncpa [#allocation3], 1
    %401 = vsyncpa [#allocation5], 1

</llo_original>
